<compile_context>
chip_gen: v7x
topology: tpu7x:2x2x1
jax: 0.10.0
libtpu: 0.0.40
codegen_flags: <defaults>
</compile_context>

<pallas_src>
import jax
import jax.numpy as jnp
from jax.experimental import pallas as pl
from jax.experimental.pallas import tpu as pltpu

IGNORE_INDEX = -100


def _round_up(x, m):
    return ((x + m - 1) // m) * m


def _cdiv(a, b):
    return -(-a // b)


# ----------------------------------------------------------------------------
# kernel
# ----------------------------------------------------------------------------
def _make_ce_kernel(tile_v, vocab_size):
    mask_tail_cols = (vocab_size % tile_v) != 0

    def kernel(logits_ref, labels_ref, loss_ref, m_ref, l_ref, tgt_ref):
        # logits_ref: (1, tile_t, tile_v) native dtype
        # labels_ref: (1, tile_t, 1) int32 (shifted, padded with IGNORE_INDEX)
        # loss_ref  : (1, tile_t, 1) f32 per-row loss output
        # scratch   : m/l/tgt (tile_t, 1) f32 — online logsumexp state
        v_idx = pl.program_id(2)
        last_v = pl.num_programs(2) - 1

        @pl.when(v_idx == 0)
        def _init():
            m_ref[...] = jnp.full_like(m_ref, -jnp.inf)
            l_ref[...] = jnp.zeros_like(l_ref)
            tgt_ref[...] = jnp.zeros_like(tgt_ref)

        x = logits_ref[0]                                  # (tile_t, tile_v) native dtype
        labels = labels_ref[0]                             # (tile_t, 1) int32
        valid = labels != IGNORE_INDEX                     # (tile_t, 1) bool

        # local lane index (constant, hoisted); global offset is folded into the
        # (tile_t,1)-shaped label shift / scalar tail limit instead.
        col_local = jax.lax.broadcasted_iota(jnp.int32, x.shape, 1)
        ones_nat = jnp.ones((x.shape[1], 1), x.dtype)      # MXU row-sum helpers
        ones_f32 = jnp.ones((x.shape[1], 1), jnp.float32)

        def online_update(x_lse):
            # streaming logsumexp over vocab tiles; only the exp input is cast
            # to f32, max / mask stay in the native dtype.
            row_max = jnp.max(x_lse, axis=-1, keepdims=True).astype(jnp.float32)
            m_prev = m_ref[...]
            m_new = jnp.maximum(m_prev, row_max)
            p = jnp.exp(x_lse.astype(jnp.float32) - m_new)          # EUP
            part = jnp.dot(p, ones_f32,                              # MXU row-sum
                           preferred_element_type=jnp.float32,
                           precision=jax.lax.Precision.HIGHEST)
            l_ref[...] = jnp.exp(m_prev - m_new) * l_ref[...] + part
            m_ref[...] = m_new

        if mask_tail_cols:
            # interior tiles: no tail-column work at all
            @pl.when(v_idx != last_v)
            def _interior():
                online_update(x)

            # last tile: mask the columns past the true vocab (block padding)
            @pl.when(v_idx == last_v)
            def _edge():
                limit = vocab_size - v_idx * tile_v
                xm = jnp.where(col_local < limit, x,
                               jnp.asarray(-jnp.inf, x.dtype))
                online_update(xm)
        else:
            online_update(x)

        # ---- fused target-logit gather: one-hot select + MXU row-sum -------
        # IGNORE_INDEX (-100) shifted by the tile offset never matches a lane.
        safe_local = labels - v_idx * tile_v               # (tile_t, 1)
        onehot_x = jnp.where(col_local == safe_local, x, jnp.zeros((), x.dtype))
        tgt_ref[...] += jnp.dot(onehot_x, ones_nat,
                                preferred_element_type=jnp.float32,
                                precision=jax.lax.Precision.HIGHEST)

        # ---- finalize: per-row loss written once per (b, t) group ----------
        @pl.when(v_idx == last_v)
        def _fin():
            lse = m_ref[...] + jnp.log(l_ref[...])
            # keep the select (NOT a multiply-by-mask): padded garbage rows may
            # carry NaN/Inf and must be dropped, not scaled.
            loss_ref[0] = jnp.where(valid, lse - tgt_ref[...], 0.0)

    return kernel


# ----------------------------------------------------------------------------
# tiling / VMEM budgeting helpers
# ----------------------------------------------------------------------------
def _vmem_budget():
    """(vmem_limit_bytes, per-block byte cap) derived from the chip generation."""
    vmem_cap = None
    try:
        info = pltpu.get_tpu_info()
        for name in ("vmem_capacity_bytes", "vmem_size_bytes", "vmem_bytes"):
            v = getattr(info, name, None)
            if isinstance(v, int) and v > 0:
                vmem_cap = v
                break
    except Exception:
        vmem_cap = None
    if vmem_cap is None:
        vmem_cap = 64 << 20                       # conservative (v7x-sized) fallback

    if vmem_cap <= (96 << 20):                    # v7x-class: 64 MiB physical / TC
        vmem_limit = int(min(48 << 20, max(vmem_cap - (12 << 20), 16 << 20)))
        block_cap_bytes = 4 << 20                 # ~4 MiB streamed logits blocks
    else:                                         # v5e / v6e: 128 MiB physical
        vmem_limit = 64 << 20
        block_cap_bytes = 8 << 20                 # ~8 MiB streamed logits blocks
    return vmem_limit, block_cap_bytes


def _pick_tile_t(Tm1, want):
    """Largest sublane-aligned time tile whose padded tail wastes <= 12.5%."""
    want = max(8, _round_up(min(want, _round_up(Tm1, 8)), 8))
    cands = []
    t = want
    while t >= 8:
        cands.append(t)
        t = _round_up(t // 2, 8) if t > 8 else 0

    def waste(t):
        return _cdiv(Tm1, t) * t - Tm1

    for t in cands:                               # descending
        if waste(t) * 8 <= Tm1:
            return t
    return min(cands, key=waste)


# ----------------------------------------------------------------------------
# wrapper
# ----------------------------------------------------------------------------
def gpt_lm_loss(logits, labels, *, tile_t=None, tile_v=None):
    """logits: [B, T, V] (any float dtype), labels: [B, T] int -> scalar f32 mean CE."""
    B, T, V = logits.shape
    assert labels.shape == (B, T)
    Tm1 = T - 1
    assert Tm1 >= 1, "need at least 2 time steps for the causal shift"

    itemsize = jnp.dtype(logits.dtype).itemsize
    vmem_limit, block_cap_bytes = _vmem_budget()

    # ---- time tiling: big tiles, but avoid mostly-garbage edge tiles -------
    tile_t = _pick_tile_t(Tm1, 256 if tile_t is None else tile_t)
    num_t = _cdiv(Tm1, tile_t)
    t_pad = num_t * tile_t

    # ---- vocab tiling: as large as the per-generation VMEM budget allows ---
    if tile_v is None:
        # 2x double-buffered logits blocks + ~4 f32-sized in-kernel temporaries
        per_elem = 2 * itemsize + 16
        fit = (vmem_limit - (6 << 20)) // (tile_t * per_elem)
        cap = block_cap_bytes // (tile_t * itemsize)
        tile_v = int(max(128, min(fit, cap)))
    if V % 128 == 0:
        tile_v = min(_round_up(min(tile_v, V), 128), V)
    else:
        tile_v = V                               # full-extent block is always legal
    num_v = _cdiv(V, tile_v)

    # ---- only the tiny labels are shifted / padded on the host side --------
    shift_labels = labels[:, 1:].astype(jnp.int32)                  # (B, T-1)
    labels_padded = jnp.pad(shift_labels, ((0, 0), (0, t_pad - Tm1)),
                            constant_values=IGNORE_INDEX).reshape(B, t_pad, 1)

    cost = pl.CostEstimate(
        flops=int(6 * B * t_pad * V),
        transcendentals=int(B * t_pad * V),
        bytes_accessed=int(B * t_pad * num_v * tile_v * itemsize + 3 * B * t_pad * 4),
    )

    loss_rows = pl.pallas_call(
        _make_ce_kernel(tile_v, V),
        out_shape=jax.ShapeDtypeStruct((B, t_pad, 1), jnp.float32),
        grid_spec=pltpu.PrefetchScalarGridSpec(
            num_scalar_prefetch=0,
            grid=(B, num_t, num_v),                     # reduction axis last
            in_specs=[
                pl.BlockSpec((1, tile_t, tile_v), lambda b, t, v: (b, t, v)),
                pl.BlockSpec((1, tile_t, 1), lambda b, t, v: (b, t, 0)),
            ],
            out_specs=pl.BlockSpec((1, tile_t, 1), lambda b, t, v: (b, t, 0)),
            scratch_shapes=[pltpu.VMEM((tile_t, 1), jnp.float32)] * 3,
        ),
        compiler_params=pltpu.CompilerParams(
            dimension_semantics=("parallel", "parallel", "arbitrary"),
            vmem_limit_bytes=vmem_limit),
        cost_estimate=cost,
    )(logits, labels_padded)

    count = jnp.sum((shift_labels != IGNORE_INDEX).astype(jnp.float32))
    return jnp.sum(loss_rows) / count


# ----------------------------------------------------------------------------
# pure-JAX reference of the PyTorch module semantics
# ----------------------------------------------------------------------------
def _reference_loss(logits, labels):
    V = logits.shape[-1]
    sl = logits[:, :-1, :].reshape(-1, V).astype(jnp.float32)
    tl = labels[:, 1:].reshape(-1)
    valid = tl != IGNORE_INDEX
    safe = jnp.where(valid, tl, 0)
    lse = jax.scipy.special.logsumexp(sl, axis=-1)
    tgt = jnp.take_along_axis(sl, safe[:, None], axis=-1)[:, 0]
    per = jnp.where(valid, lse - tgt, 0.0)
    return jnp.sum(per) / jnp.sum(valid.astype(jnp.float32))


if __name__ == "__main__":
    key = jax.random.PRNGKey(0)

    def _check(B, T, V, tile_v, k, dtype=jnp.float32, tol=1e-5):
        k1, k2 = jax.random.split(k)
        logits = jax.random.normal(k1, (B, T, V), dtype=jnp.float32).astype(dtype)
        labels = jax.random.randint(k2, (B, T), 0, V, dtype=jnp.int32)
        labels = labels.at[0, 3].set(IGNORE_INDEX)    # exercise ignore_index mask
        out = jax.block_until_ready(gpt_lm_loss(logits, labels, tile_v=tile_v))
        ref = jax.block_until_ready(_reference_loss(logits, labels))
        assert jnp.allclose(out, ref, rtol=tol, atol=tol), (dtype, out, ref)

    ks = jax.random.split(key, 4)
    _check(2, 8, 128, 128, ks[0])                                  # single vocab tile
    _check(2, 8, 384, 256, ks[1])                                  # online LSE + masked tail tile
    _check(2, 8, 512, None, ks[2])                                 # auto tile sizing
    _check(2, 8, 384, 256, ks[3], dtype=jnp.bfloat16, tol=2e-4)    # native bf16 path
    print("KERNEL_OK")
</pallas_src>

<mosaic_0001>
module attributes {stable_mosaic.version = 11 : i64} {
  func.func @kernel(%arg0: i32, %arg1: i32, %arg2: i32, %arg3: memref<1x8x128xf32, #tpu.memory_space<vmem>>, %arg4: memref<1x8x1xi32, #tpu.memory_space<vmem>>, %arg5: memref<1x8x1xf32, #tpu.memory_space<vmem>>, %arg6: memref<8x1xf32, #tpu.memory_space<vmem>>, %arg7: memref<8x1xf32, #tpu.memory_space<vmem>>, %arg8: memref<8x1xf32, #tpu.memory_space<vmem>>) attributes {dimension_semantics = [#tpu.dimension_semantics<parallel>, #tpu.dimension_semantics<parallel>, #tpu.dimension_semantics<arbitrary>], iteration_bounds = array<i64: 2, 1, 1>, scalar_prefetch = 0 : i64, scratch_operands = 3 : i64, tpu.core_type = #tpu.core_type<tc>, window_params = [{transform_indices = @transform_0, window_bounds = array<i64: 1, 8, 128>}, {transform_indices = @transform_1, window_bounds = array<i64: 1, 8, 1>}, {transform_indices = @transform_2, window_bounds = array<i64: 1, 8, 1>}]} {
    %c0_i32 = arith.constant 0 : i32
    %0 = arith.cmpi eq, %arg2, %c0_i32 : i32
    %1 = arith.extui %0 : i1 to i32
    %c0_i32_0 = arith.constant 0 : i32
    %2 = arith.cmpi ne, %1, %c0_i32_0 : i32
    scf.if %2 {
      %cst_25 = arith.constant 0xFF800000 : f32
      %41 = vector.broadcast %cst_25 : f32 to vector<8x1xf32>
      %c0_26 = arith.constant 0 : index
      %c0_27 = arith.constant 0 : index
      %42 = vector.load %arg6[%c0_26, %c0_27] : memref<8x1xf32, #tpu.memory_space<vmem>>, vector<8x1xf32>
      tpu.vector_store %arg6[%c0_26, %c0_27], %41 {strides = array<i32>} : memref<8x1xf32, #tpu.memory_space<vmem>>, vector<8x1xf32>,
      %cst_28 = arith.constant 0.000000e+00 : f32
      %43 = vector.broadcast %cst_28 : f32 to vector<8x1xf32>
      %c0_29 = arith.constant 0 : index
      %c0_30 = arith.constant 0 : index
      %44 = vector.load %arg7[%c0_29, %c0_30] : memref<8x1xf32, #tpu.memory_space<vmem>>, vector<8x1xf32>
      tpu.vector_store %arg7[%c0_29, %c0_30], %43 {strides = array<i32>} : memref<8x1xf32, #tpu.memory_space<vmem>>, vector<8x1xf32>,
      %cst_31 = arith.constant 0.000000e+00 : f32
      %45 = vector.broadcast %cst_31 : f32 to vector<8x1xf32>
      %c0_32 = arith.constant 0 : index
      %c0_33 = arith.constant 0 : index
      %46 = vector.load %arg8[%c0_32, %c0_33] : memref<8x1xf32, #tpu.memory_space<vmem>>, vector<8x1xf32>
      tpu.vector_store %arg8[%c0_32, %c0_33], %45 {strides = array<i32>} : memref<8x1xf32, #tpu.memory_space<vmem>>, vector<8x1xf32>,
    } else {
    }
    %c0 = arith.constant 0 : index
    %c0_1 = arith.constant 0 : index
    %c0_2 = arith.constant 0 : index
    %3 = vector.load %arg3[%c0, %c0_1, %c0_2] : memref<1x8x128xf32, #tpu.memory_space<vmem>>, vector<1x8x128xf32>
    %4 = vector.shape_cast %3 : vector<1x8x128xf32> to vector<8x128xf32>
    %c0_3 = arith.constant 0 : index
    %c0_4 = arith.constant 0 : index
    %c0_5 = arith.constant 0 : index
    %5 = vector.load %arg4[%c0_3, %c0_4, %c0_5] : memref<1x8x1xi32, #tpu.memory_space<vmem>>, vector<1x8x1xi32>
    %6 = vector.shape_cast %5 : vector<1x8x1xi32> to vector<8x1xi32>
    %c-100_i32 = arith.constant -100 : i32
    %7 = vector.broadcast %c-100_i32 : i32 to vector<8x1xi32>
    %8 = arith.cmpi ne, %6, %7 : vector<8x1xi32>
    %9 = tpu.iota {dimensions = array<i32: 1>} : vector<8x128xi32>
    %cst = arith.constant 1.000000e+00 : f32
    %10 = vector.broadcast %cst : f32 to vector<128x1xf32>
    %cst_6 = arith.constant 1.000000e+00 : f32
    %11 = vector.broadcast %cst_6 : f32 to vector<128x1xf32>
    %cst_7 = arith.constant dense<0xFF800000> : vector<8xf32>
    %12 = vector.multi_reduction <maximumf>, %4, %cst_7 [1] : vector<8x128xf32> to vector<8xf32>
    %13 = vector.shape_cast %12 : vector<8xf32> to vector<8x1xf32>
    %c0_8 = arith.constant 0 : index
    %c0_9 = arith.constant 0 : index
    %14 = vector.load %arg6[%c0_8, %c0_9] : memref<8x1xf32, #tpu.memory_space<vmem>>, vector<8x1xf32>
    %15 = arith.maximumf %14, %13 : vector<8x1xf32>
    %16 = vector.broadcast %15 : vector<8x1xf32> to vector<8x128xf32>
    %17 = arith.subf %4, %16 : vector<8x128xf32>
    %18 = math.exp %17 : vector<8x128xf32>
    %cst_10 = arith.constant dense<0.000000e+00> : vector<8x1xf32>
    %19 = tpu.matmul %18, %11, %cst_10 {dimension_numbers = #tpu.dot_dimension_numbers<[1], [0], [0], [1], [0, 0, 1, 1], [], []>, precision = #tpu.contract_precision<fp32>} : vector<8x128xf32>, vector<128x1xf32>, vector<8x1xf32> -> vector<8x1xf32>
    %20 = arith.subf %14, %15 : vector<8x1xf32>
    %21 = math.exp %20 : vector<8x1xf32>
    %c0_11 = arith.constant 0 : index
    %c0_12 = arith.constant 0 : index
    %22 = vector.load %arg7[%c0_11, %c0_12] : memref<8x1xf32, #tpu.memory_space<vmem>>, vector<8x1xf32>
    %23 = arith.mulf %21, %22 : vector<8x1xf32>
    %24 = arith.addf %23, %19 : vector<8x1xf32>
    %c0_13 = arith.constant 0 : index
    %c0_14 = arith.constant 0 : index
    %25 = vector.load %arg7[%c0_13, %c0_14] : memref<8x1xf32, #tpu.memory_space<vmem>>, vector<8x1xf32>
    tpu.vector_store %arg7[%c0_13, %c0_14], %24 {strides = array<i32>} : memref<8x1xf32, #tpu.memory_space<vmem>>, vector<8x1xf32>,
    %c0_15 = arith.constant 0 : index
    %c0_16 = arith.constant 0 : index
    %26 = vector.load %arg6[%c0_15, %c0_16] : memref<8x1xf32, #tpu.memory_space<vmem>>, vector<8x1xf32>
    tpu.vector_store %arg6[%c0_15, %c0_16], %15 {strides = array<i32>} : memref<8x1xf32, #tpu.memory_space<vmem>>, vector<8x1xf32>,
    %c128_i32 = arith.constant 128 : i32
    %27 = arith.muli %arg2, %c128_i32 : i32
    %28 = vector.broadcast %27 : i32 to vector<8x1xi32>
    %29 = arith.subi %6, %28 : vector<8x1xi32>
    %30 = vector.broadcast %29 : vector<8x1xi32> to vector<8x128xi32>
    %31 = arith.cmpi eq, %9, %30 : vector<8x128xi32>
    %cst_17 = arith.constant 0.000000e+00 : f32
    %32 = vector.broadcast %cst_17 : f32 to vector<8x128xf32>
    %33 = arith.select %31, %4, %32 : vector<8x128xi1>, vector<8x128xf32>
    %c0_18 = arith.constant 0 : index
    %c0_19 = arith.constant 0 : index
    %34 = vector.load %arg8[%c0_18, %c0_19] : memref<8x1xf32, #tpu.memory_space<vmem>>, vector<8x1xf32>
    %cst_20 = arith.constant dense<0.000000e+00> : vector<8x1xf32>
    %35 = tpu.matmul %33, %10, %cst_20 {dimension_numbers = #tpu.dot_dimension_numbers<[1], [0], [0], [1], [0, 0, 1, 1], [], []>, precision = #tpu.contract_precision<fp32>} : vector<8x128xf32>, vector<128x1xf32>, vector<8x1xf32> -> vector<8x1xf32>
    %36 = arith.addf %34, %35 : vector<8x1xf32>
    %c0_21 = arith.constant 0 : index
    %c0_22 = arith.constant 0 : index
    %37 = vector.load %arg8[%c0_21, %c0_22] : memref<8x1xf32, #tpu.memory_space<vmem>>, vector<8x1xf32>
    tpu.vector_store %arg8[%c0_21, %c0_22], %36 {strides = array<i32>} : memref<8x1xf32, #tpu.memory_space<vmem>>, vector<8x1xf32>,
    %c0_i32_23 = arith.constant 0 : i32
    %38 = arith.cmpi eq, %arg2, %c0_i32_23 : i32
    %39 = arith.extui %38 : i1 to i32
    %c0_i32_24 = arith.constant 0 : i32
    %40 = arith.cmpi ne, %39, %c0_i32_24 : i32
    scf.if %40 {
      %c0_25 = arith.constant 0 : index
      %c0_26 = arith.constant 0 : index
      %41 = vector.load %arg6[%c0_25, %c0_26] : memref<8x1xf32, #tpu.memory_space<vmem>>, vector<8x1xf32>
      %c0_27 = arith.constant 0 : index
      %c0_28 = arith.constant 0 : index
      %42 = vector.load %arg7[%c0_27, %c0_28] : memref<8x1xf32, #tpu.memory_space<vmem>>, vector<8x1xf32>
      %43 = math.log %42 : vector<8x1xf32>
      %44 = arith.addf %41, %43 : vector<8x1xf32>
      %c0_29 = arith.constant 0 : index
      %c0_30 = arith.constant 0 : index
      %45 = vector.load %arg8[%c0_29, %c0_30] : memref<8x1xf32, #tpu.memory_space<vmem>>, vector<8x1xf32>
      %46 = arith.subf %44, %45 : vector<8x1xf32>
      %cst_31 = arith.constant 0.000000e+00 : f32
      %47 = vector.broadcast %cst_31 : f32 to vector<8x1xf32>
      %48 = arith.select %8, %46, %47 : vector<8x1xi1>, vector<8x1xf32>
      %c0_32 = arith.constant 0 : index
      %c0_33 = arith.constant 0 : index
      %c0_34 = arith.constant 0 : index
      %49 = vector.load %arg5[%c0_32, %c0_33, %c0_34] : memref<1x8x1xf32, #tpu.memory_space<vmem>>, vector<1x8x1xf32>
      %50 = vector.shape_cast %49 : vector<1x8x1xf32> to vector<8x1xf32>
      %51 = vector.shape_cast %48 : vector<8x1xf32> to vector<1x8x1xf32>
      tpu.vector_store %arg5[%c0_32, %c0_33, %c0_34], %51 {strides = array<i32>} : memref<1x8x1xf32, #tpu.memory_space<vmem>>, vector<1x8x1xf32>,
    } else {
    }
    return
  }
  func.func @transform_0(%arg0: i32, %arg1: i32, %arg2: i32) -> (i32, i32, i32) {
    %c0_i32 = arith.constant 0 : i32
    return %arg0, %arg1, %arg2 : i32, i32, i32
  }
  func.func @transform_1(%arg0: i32, %arg1: i32, %arg2: i32) -> (i32, i32, i32) {
    %c0_i32 = arith.constant 0 : i32
    %c0_i32_0 = arith.constant 0 : i32
    return %arg0, %arg1, %c0_i32 : i32, i32, i32
  }
  func.func @transform_2(%arg0: i32, %arg1: i32, %arg2: i32) -> (i32, i32, i32) {
    %c0_i32 = arith.constant 0 : i32
    %c0_i32_0 = arith.constant 0 : i32
    return %arg0, %arg1, %c0_i32 : i32, i32, i32
  }
}

</mosaic_0001>

<llo_original>
// kernel: tpu_custom_call.1
$region0: #{tpu_custom_call.1}
  #allocation0 [shape = 'u32[]', space=smem, size = 0x4, offset = 0x4, fixed_abs, tag = 'smem constant byte address 0x4 - core index']
  #allocation1 [shape = 'u32[144,128]{1,0:T(1,128)}', space=vmem, size = 0x12000, scoped, tag = 'internal scratch']
  #allocation2 [shape = 'f32[8,1]{1,0:T(8,128)}', space=vmem, size = 0x1000, scoped, tag = 'scratch operand']
  #allocation3 [shape = 'f32[8,1]{1,0:T(8,128)}', space=vmem, size = 0x1000, scoped, tag = 'scratch operand']
  #allocation4 [shape = 'f32[8,1]{1,0:T(8,128)}', space=vmem, size = 0x1000, scoped, tag = 'scratch operand']
  %s0 = inlined_call_operand.vmem [shape: f32[2,8,128], index: 0, kind: input, shape index: {}]
  %s1 = inlined_call_operand.vmem [shape: s32[2,8,1], index: 1, kind: input, shape index: {}]
  %s2 = inlined_call_operand.vmem [shape: f32[2,8,1], index: 2, kind: output, shape index: {}]
  %s3 = sld [smem:[#allocation0]]
  $region49: #{tpu_custom_call.1} parent=0
    _
  %s5 = ssub.s32 1, %s3
  %s6 = scalar_select 0, %s5, %s3
  loop: start=0, step=1, limit=4
  $region2: #{tpu_custom_call.1} parent=0 // loop_pre_header
    _
  $region3: #{tpu_custom_call.1} parent=0 // loop_header
    %s8 = sphi 0, %s12
    %p9 = scmp.ge.s32.totalorder %s8, 4
    %s15 = sphi 0, %s34
    %s16 = sphi 0, %s30
    %s17 = sphi 0, %s26
    %s18 = sphi 0, %s15
    %s19 = sphi 0, %s16
    %s20 = sphi 0, %s17
    %s21 = sphi 0, %s18
    %s22 = sphi 0, %s19
    %s23 = sphi 0, %s20
    %s41 = sphi 0, %s43
    %s44 = sphi 0, %s41
    %s45 = sphi 0, %s44
    %s61 = sphi 0, %s45
    %s69 = sphi 0, %s71
    %s72 = sphi 0, %s69
    %s73 = sphi 0, %s72
    %s89 = sphi 0, %s73
    %s97 = sphi 0, %s99
    %s100 = sphi 0, %s97
    %s101 = sphi 0, %s100
    %s117 = sphi 0, %s101
  $region4: #{tpu_custom_call.1} parent=0 // loop_header_branch
    %11 = sbr.rel (%p9) target = $region8
  $region5: #{tpu_custom_call.1} parent=0 // loop_body
    %s13 = ssub.s32 %s8, 1
    %s14 = ssub.s32 %s8, 2
    %s24 = sadd.s32 1, %s17
    %p25 = scmp.ge.s32.totalorder %s24, 1
    %s26 = scalar_select %p25, 0, %s24
    %s27 = sadd.s32 1, %s16
    %s28 = scalar_select %p25, %s27, %s16
    %p29 = scmp.ge.s32.totalorder %s28, 1
    %s30 = scalar_select %p29, 0, %s28
    %s31 = sadd.s32 1, %s15
    %s32 = scalar_select %p29, %s31, %s15
    %p33 = scmp.ge.s32.totalorder %s32, 2
    %s34 = scalar_select %p33, 0, %s32
    %s35 = ssub.s32 %s15, %s34
    %s36 = ssub.s32 %s16, %s30
    %s37 = sor.u32 %s35, %s36
    %s38 = ssub.s32 %s17, %s26
    %s39 = sor.u32 %s37, %s38
    %p40 = scmp.eq.s32.totalorder %s39, 0
    %s42 = sadd.s32 %s41, 1
    %s43 = scalar_select %p40, %s41, %s42
    %p46 = pneg %p40
    %p47 = scmp.eq.s32.totalorder %s8, 1
    %p48 = por %p46, %p47
    %p49 = scmp.ne.s32.totalorder %s41, %s44
    %p50 = scmp.eq.s32.totalorder %s8, 0
    %p51 = por %p49, %p50
    %p52 = scmp.ne.s32.totalorder %s41, %s44
    %p53 = scmp.eq.s32.totalorder %s13, 1
    %p54 = por %p52, %p53
    %p55 = scmp.ne.s32.totalorder %s44, %s45
    %p56 = scmp.eq.s32.totalorder %s13, 0
    %p57 = por %p55, %p56
    %p58 = scmp.ne.s32.totalorder %s44, %s45
    %p59 = scmp.eq.s32.totalorder %s14, 1
    %p60 = por %p58, %p59
    %p62 = scmp.ne.s32.totalorder %s45, %s61
    %p63 = scmp.eq.s32.totalorder %s14, 0
    %p64 = por %p62, %p63
    %s65 = ssub.s32 %s15, %s34
    %s66 = ssub.s32 %s16, %s30
    %s67 = sor.u32 %s65, %s66
    %p68 = scmp.eq.s32.totalorder %s67, 0
    %s70 = sadd.s32 %s69, 1
    %s71 = scalar_select %p68, %s69, %s70
    %p74 = pneg %p68
    %p75 = scmp.eq.s32.totalorder %s8, 1
    %p76 = por %p74, %p75
    %p77 = scmp.ne.s32.totalorder %s69, %s72
    %p78 = scmp.eq.s32.totalorder %s8, 0
    %p79 = por %p77, %p78
    %p80 = scmp.ne.s32.totalorder %s69, %s72
    %p81 = scmp.eq.s32.totalorder %s13, 1
    %p82 = por %p80, %p81
    %p83 = scmp.ne.s32.totalorder %s72, %s73
    %p84 = scmp.eq.s32.totalorder %s13, 0
    %p85 = por %p83, %p84
    %p86 = scmp.ne.s32.totalorder %s72, %s73
    %p87 = scmp.eq.s32.totalorder %s14, 1
    %p88 = por %p86, %p87
    %p90 = scmp.ne.s32.totalorder %s73, %s89
    %p91 = scmp.eq.s32.totalorder %s14, 0
    %p92 = por %p90, %p91
    %s93 = ssub.s32 %s15, %s34
    %s94 = ssub.s32 %s16, %s30
    %s95 = sor.u32 %s93, %s94
    %p96 = scmp.eq.s32.totalorder %s95, 0
    %s98 = sadd.s32 %s97, 1
    %s99 = scalar_select %p96, %s97, %s98
    %p102 = pneg %p96
    %p103 = scmp.eq.s32.totalorder %s8, 1
    %p104 = por %p102, %p103
    %p105 = scmp.ne.s32.totalorder %s97, %s100
    %p106 = scmp.eq.s32.totalorder %s8, 0
    %p107 = por %p105, %p106
    %p108 = scmp.ne.s32.totalorder %s97, %s100
    %p109 = scmp.eq.s32.totalorder %s13, 1
    %p110 = por %p108, %p109
    %p111 = scmp.ne.s32.totalorder %s100, %s101
    %p112 = scmp.eq.s32.totalorder %s13, 0
    %p113 = por %p111, %p112
    %p114 = scmp.ne.s32.totalorder %s100, %s101
    %p115 = scmp.eq.s32.totalorder %s14, 1
    %p116 = por %p114, %p115
    %p118 = scmp.ne.s32.totalorder %s101, %s117
    %p119 = scmp.eq.s32.totalorder %s14, 0
    %p120 = por %p118, %p119
    %p121 = scmp.le.s32.totalorder 1, %s8
    %p122 = scmp.lt.s32.totalorder %s8, 3
    %p123 = pnand %p121, %p122
    %p124 = pneg %p123
    // Predicated region
    $region9: #{tpu_custom_call.1} parent=5 // pred_check
      _
    $region10: #{tpu_custom_call.1} parent=5 // pred_check_branch
      %126 = sbr.rel (%p123) target = $region12
    $region11: #{tpu_custom_call.1} parent=5 // pred_region
      %s127 = ssub.s32 %s8, 1
    $region12: #{tpu_custom_call.1} parent=5 // pred_fallthru
      _
    %p128 = scmp.lt.s32.totalorder %s8, 2
    // Predicated region
    $region13: #{tpu_custom_call.1} parent=5 // pred_check
      %p129 = pneg %p128
    $region14: #{tpu_custom_call.1} parent=5 // pred_check_branch
      %131 = sbr.rel (%p129) target = $region16
    $region15: #{tpu_custom_call.1} parent=5 // pred_region
      // Predicated region
      $region17: #{tpu_custom_call.1} parent=15 // pred_check
        %p132 = pneg %p51
      $region18: #{tpu_custom_call.1} parent=15 // pred_check_branch
        %134 = sbr.rel (%p132) target = $region20
      $region19: #{tpu_custom_call.1} parent=15 // pred_region
        %p135 = scmp.lt.s32.totalorder %s15, 1
        %s136 = scalar_select %p135, %s15, 1
        %p137 = scmp.lt.s32.totalorder %s16, 0
        %s138 = scalar_select %p137, %s16, 0
        %p139 = scmp.lt.s32.totalorder %s17, 0
        %s140 = scalar_select %p139, %s17, 0
        %s141 = sadd.s32 %s140, %s138
        %s142 = sadd.s32 %s141, %s136
        %s143 = smul.addr %s142, 8
        %s144 = scalar_lea.vmem %s0, %s143
      $region20: #{tpu_custom_call.1} parent=15 // pred_fallthru
        _
      // Predicated region
      $region21: #{tpu_custom_call.1} parent=15 // pred_check
        %p145 = pneg %p79
      $region22: #{tpu_custom_call.1} parent=15 // pred_check_branch
        %147 = sbr.rel (%p145) target = $region24
      $region23: #{tpu_custom_call.1} parent=15 // pred_region
        %p148 = scmp.lt.s32.totalorder %s15, 1
        %s149 = scalar_select %p148, %s15, 1
        %p150 = scmp.lt.s32.totalorder %s16, 0
        %s151 = scalar_select %p150, %s16, 0
        %s152 = sadd.s32 %s151, %s149
        %s153 = smul.addr %s152, 8
        %s154 = scalar_lea.vmem %s1, %s153
      $region24: #{tpu_custom_call.1} parent=15 // pred_fallthru
        _
    $region16: #{tpu_custom_call.1} parent=5 // pred_fallthru
      _
    %p155 = scmp.le.s32.totalorder 1, %s8
    %p156 = scmp.lt.s32.totalorder %s8, 3
    %p157 = pnand %p155, %p156
    %p158 = pneg %p157
    // Predicated region
    $region25: #{tpu_custom_call.1} parent=5 // pred_check
      _
    $region26: #{tpu_custom_call.1} parent=5 // pred_check_branch
      %160 = sbr.rel (%p157) target = $region28
    $region27: #{tpu_custom_call.1} parent=5 // pred_region
      %s161 = ssub.s32 %s8, 1
      %p162 = scmp.lt.s32.totalorder %s18, 1
      %s163 = scalar_select %p162, %s18, 1
      %p164 = scmp.lt.s32.totalorder %s19, 0
      %s165 = scalar_select %p164, %s19, 0
      %p166 = scmp.lt.s32.totalorder %s20, 0
      %s167 = scalar_select %p166, %s20, 0
      %s168 = sadd.s32 %s167, %s165
      %s169 = sadd.s32 %s168, %s163
      %s170 = smul.addr %s169, 8
      %s171 = scalar_lea.vmem %s0, %s170
      %p172 = pneg %p57
      %p173 = pneg %p54
      %p174 = scmp.lt.s32.totalorder %s18, 1
      %s175 = scalar_select %p174, %s18, 1
      %p176 = scmp.lt.s32.totalorder %s19, 0
      %s177 = scalar_select %p176, %s19, 0
      %s178 = sadd.s32 %s177, %s175
      %s179 = smul.addr %s178, 8
      %s180 = scalar_lea.vmem %s1, %s179
      %p181 = pneg %p85
      %p182 = pneg %p82
      %p183 = pneg %p113
      %p184 = pneg %p110
      %p185 = scmp.lt.s32.totalorder %s18, 1
      %s186 = scalar_select %p185, %s18, 1
      %p187 = scmp.lt.s32.totalorder %s19, 0
      %s188 = scalar_select %p187, %s19, 0
      %s189 = sadd.s32 %s188, %s186
      %s190 = smul.addr %s189, 8
      %s191 = scalar_lea.vmem %s2, %s190
      %p192 = scmp.lt.s32.totalorder %s18, 1
      %s193 = scalar_select %p192, %s18, 1
      %p194 = scmp.lt.s32.totalorder %s19, 0
      %s195 = scalar_select %p194, %s19, 0
      %p196 = scmp.lt.s32.totalorder %s20, 0
      %s197 = scalar_select %p196, %s20, 0
      %s198 = sadd.s32 %s197, %s195
      %s199 = sadd.s32 %s198, %s193
      %s200 = smul.addr %s199, 8
      %s201 = scalar_lea.vmem %s0, %s200
      %p202 = scmp.lt.s32.totalorder %s18, 1
      %s203 = scalar_select %p202, %s18, 1
      %p204 = scmp.lt.s32.totalorder %s19, 0
      %s205 = scalar_select %p204, %s19, 0
      %s206 = sadd.s32 %s205, %s203
      %s207 = smul.addr %s206, 8
      %s208 = scalar_lea.vmem %s1, %s207
      %p209 = scmp.lt.s32.totalorder %s18, 1
      %s210 = scalar_select %p209, %s18, 1
      %p211 = scmp.lt.s32.totalorder %s19, 0
      %s212 = scalar_select %p211, %s19, 0
      %s213 = sadd.s32 %s212, %s210
      %s214 = smul.addr %s213, 8
      %s215 = scalar_lea.vmem %s2, %s214
      %p216 = scmp.eq.s32.totalorder %s20, 0
      // Predicated region
      $region29: #{tpu_custom_call.1} parent=27 // pred_check
        %p217 = pneg %p216
      $region30: #{tpu_custom_call.1} parent=27 // pred_check_branch
        %219 = sbr.rel (%p217) target = $region32
      $region31: #{tpu_custom_call.1} parent=27 // pred_region
        %vm220 = vcmask 7168
        %221 = vst.msk [vmem:[#allocation2] sm:$0xff] %vm220, -inf
        %222 = vst.msk [vmem:[#allocation3] sm:$0xff] %vm220, 0.0
        %223 = vst.msk [vmem:[#allocation4] sm:$0xff] %vm220, 0.0
      $region32: #{tpu_custom_call.1} parent=27 // pred_fallthru
        _
      %v224 = vld [vmem:[%s201] sm:$0xff]
      %v225 = vld [vmem:[%s208] sm:$0xff]
      %vm226 = vcmp.ne.s32.totalorder %v225, 4294967196
      %v227 = vlaneseq
      %v228 = vand.u32 %v227, 127
      %229 = vmax.xlane.f32.xlu0 %v224
      %v230 = vpop.xlane.xlu0 %229
      %v231 = vld [vmem:[#allocation2] sm:$0xff]
      %v232 = vmax.f32 %v231, %v230
      %234 = vset.pattern.permute.xlu0 0
      %235 = vperm.xlu0 %234, %v232
      %v236 = vpop.permute.xlu0 %235
      %v238 = vsub.f32 %v224, %v236
      %v239 = vmul.f32 %v238, 1.442695
      %v240 = vpow.pop %v239
      %241 = vmatprep.subr.mxu0 0.0
      %242 = vmatpush1.msra.mxu0 1.0
      %243 = vmatprep.subr.mxu0 0.0
      %244 = vmatpush1.msra.mxu0 1.0
      %245 = vmatprep.subr.mxu0 0.0
      %246 = vmatpush1.msra.mxu0 1.0
      %247 = vmatprep.subr.mxu0 0.0
      %248 = vmatpush1.msra.mxu0 1.0
      %249 = vmatprep.subr.mxu0 0.0
      %250 = vmatpush1.msra.mxu0 1.0
      %251 = vmatprep.subr.mxu0 0.0
      %252 = vmatpush1.msra.mxu0 1.0
      %253 = vmatprep.subr.mxu0 0.0
      %254 = vmatpush1.msra.mxu0 1.0
      %255 = vmatprep.subr.mxu0 0.0
      %256 = vmatpush1.msra.mxu0 1.0
      %257 = vmatprep.subr.mxu0 0.0
      %258 = vmatpush1.msra.mxu0 1.0
      %259 = vmatprep.subr.mxu0 0.0
      %260 = vmatpush1.msra.mxu0 1.0
      %261 = vmatprep.subr.mxu0 0.0
      %262 = vmatpush1.msra.mxu0 1.0
      %263 = vmatprep.subr.mxu0 0.0
      %264 = vmatpush1.msra.mxu0 1.0
      %265 = vmatprep.subr.mxu0 0.0
      %266 = vmatpush1.msra.mxu0 1.0
      %267 = vmatprep.subr.mxu0 0.0
      %268 = vmatpush1.msra.mxu0 1.0
      %269 = vmatprep.subr.mxu0 0.0
      %270 = vmatpush1.msra.mxu0 1.0
      %271 = vmatprep.subr.mxu0 0.0
      %272 = vmatpush1.msra.mxu0 1.0
      %273 = vmatprep.subr.mxu0 0.0
      %274 = vmatpush1.msra.mxu0 0.0
      %275 = vmatprep.subr.mxu0 0.0
      %276 = vmatpush1.msra.mxu0 0.0
      %277 = vmatprep.subr.mxu0 0.0
      %278 = vmatpush1.msra.mxu0 0.0
      %279 = vmatprep.subr.mxu0 0.0
      %280 = vmatpush1.msra.mxu0 0.0
      %281 = vmatprep.subr.mxu0 0.0
      %282 = vmatpush1.msra.mxu0 0.0
      %283 = vmatprep.subr.mxu0 0.0
      %284 = vmatpush1.msra.mxu0 0.0
      %285 = vmatprep.subr.mxu0 0.0
      %286 = vmatpush1.msra.mxu0 0.0
      %287 = vmatprep.subr.mxu0 0.0
      %288 = vmatpush1.msra.mxu0 0.0
      %289 = vmatprep.subr.mxu0 0.0
      %290 = vmatpush1.msra.mxu0 0.0
      %291 = vmatprep.subr.mxu0 0.0
      %292 = vmatpush1.msra.mxu0 0.0
      %293 = vmatprep.subr.mxu0 0.0
      %294 = vmatpush1.msra.mxu0 0.0
      %295 = vmatprep.subr.mxu0 0.0
      %296 = vmatpush1.msra.mxu0 0.0
      %297 = vmatprep.subr.mxu0 0.0
      %298 = vmatpush1.msra.mxu0 0.0
      %299 = vmatprep.subr.mxu0 0.0
      %300 = vmatpush1.msra.mxu0 0.0
      %301 = vmatprep.subr.mxu0 0.0
      %302 = vmatpush1.msra.mxu0 0.0
      %303 = vmatprep.subr.mxu0 0.0
      %304 = vmatpush1.msra.mxu0 0.0
      %305 = vmatprep.mubr.f32.mxu0 0.0
      %v306 = vand.u32 %v240, 4294901760
      %v307 = vsub.f32 %v240, %v306
      %v308 = vand.u32 %v307, 4294901760
      %v309 = vsub.f32 %v307, %v308
      %v310 = vand.u32 %v309, 4294901760
      %311 = vmatmul.mubr.f32.gmra.mrb[0].mxu0 %v310
      %v312 = vpop.f32.mrb[0].mxu0
      %v313 = vadd.f32 0.0, %v312
      %v314 = vpop.f32.mrb[0].mxu0
      %315 = vdwg.mxu0
      %316 = vmatprep.subr.mxu0 0.0
      %317 = vmatpush1.msra.mxu0 0.0
      %318 = vmatprep.subr.mxu0 0.0
      %319 = vmatpush1.msra.mxu0 0.0
      %320 = vmatprep.subr.mxu0 0.0
      %321 = vmatpush1.msra.mxu0 0.0
      %322 = vmatprep.subr.mxu0 0.0
      %323 = vmatpush1.msra.mxu0 0.0
      %324 = vmatprep.subr.mxu0 0.0
      %325 = vmatpush1.msra.mxu0 0.0
      %326 = vmatprep.subr.mxu0 0.0
      %327 = vmatpush1.msra.mxu0 0.0
      %328 = vmatprep.subr.mxu0 0.0
      %329 = vmatpush1.msra.mxu0 0.0
      %330 = vmatprep.subr.mxu0 0.0
      %331 = vmatpush1.msra.mxu0 0.0
      %332 = vmatprep.subr.mxu0 0.0
      %333 = vmatpush1.msra.mxu0 0.0
      %334 = vmatprep.subr.mxu0 0.0
      %335 = vmatpush1.msra.mxu0 0.0
      %336 = vmatprep.subr.mxu0 0.0
      %337 = vmatpush1.msra.mxu0 0.0
      %338 = vmatprep.subr.mxu0 0.0
      %339 = vmatpush1.msra.mxu0 0.0
      %340 = vmatprep.subr.mxu0 0.0
      %341 = vmatpush1.msra.mxu0 0.0
      %342 = vmatprep.subr.mxu0 0.0
      %343 = vmatpush1.msra.mxu0 0.0
      %344 = vmatprep.subr.mxu0 0.0
      %345 = vmatpush1.msra.mxu0 0.0
      %346 = vmatprep.subr.mxu0 0.0
      %347 = vmatpush1.msra.mxu0 0.0
      %348 = vmatprep.subr.mxu0 0.0
      %349 = vmatpush1.msra.mxu0 0.0
      %350 = vmatprep.subr.mxu0 0.0
      %351 = vmatpush1.msra.mxu0 0.0
      %352 = vmatprep.subr.mxu0 0.0
      %353 = vmatpush1.msra.mxu0 0.0
      %354 = vmatprep.subr.mxu0 0.0
      %355 = vmatpush1.msra.mxu0 0.0
      %356 = vmatprep.subr.mxu0 0.0
      %357 = vmatpush1.msra.mxu0 0.0
      %358 = vmatprep.subr.mxu0 0.0
      %359 = vmatpush1.msra.mxu0 0.0
      %360 = vmatprep.subr.mxu0 0.0
      %361 = vmatpush1.msra.mxu0 0.0
      %362 = vmatprep.subr.mxu0 0.0
      %363 = vmatpush1.msra.mxu0 0.0
      %364 = vmatprep.subr.mxu0 0.0
      %365 = vmatpush1.msra.mxu0 0.0
      %366 = vmatprep.subr.mxu0 0.0
      %367 = vmatpush1.msra.mxu0 0.0
      %368 = vmatprep.subr.mxu0 0.0
      %369 = vmatpush1.msra.mxu0 0.0
      %370 = vmatprep.subr.mxu0 0.0
      %371 = vmatpush1.msra.mxu0 0.0
      %372 = vmatprep.subr.mxu0 0.0
      %373 = vmatpush1.msra.mxu0 0.0
      %374 = vmatprep.subr.mxu0 0.0
      %375 = vmatpush1.msra.mxu0 0.0
      %376 = vmatprep.subr.mxu0 0.0
      %377 = vmatpush1.msra.mxu0 0.0
      %378 = vmatprep.subr.mxu0 0.0
      %379 = vmatpush1.msra.mxu0 0.0
      %380 = vmatprep.mubr.f32.mxu0 0.0
      %v381 = vand.u32 %v240, 4294901760
      %382 = vmatmul.mubr.f32.gmra.mrb[0].mxu0 %v381
      %v383 = vpop.f32.mrb[0].mxu0
      %v384 = vadd.f32 %v313, %v383
      %v385 = vpop.f32.mrb[0].mxu0
      %386 = vdwg.mxu0
      %387 = vmatprep.subr.mxu0 0.0
      %388 = vmatpush1.msra.mxu0 0.0
      %389 = vmatprep.subr.mxu0 0.0
      %390 = vmatpush1.msra.mxu0 0.0
      %391 = vmatprep.subr.mxu0 0.0
      %392 = vmatpush1.msra.mxu0 0.0
      %393 = vmatprep.subr.mxu0 0.0
      %394 = vmatpush1.msra.mxu0 0.0
      %395 = vmatprep.subr.mxu0 0.0
      %396 = vmatpush1.msra.mxu0 0.0
      %397 = vmatprep.subr.mxu0 0.0
      %398 = vmatpush1.msra.mxu0 0.0
      %399 = vmatprep.subr.mxu0 0.0
      %400 = vmatpush1.msra.mxu0 0.0
      %401 = vmatprep.subr.mxu0 0.0
      %402 = vmatpush1.msra.mxu0 0.0
      %403 = vmatprep.subr.mxu0 0.0
      %404 = vmatpush1.msra.mxu0 0.0
      %405 = vmatprep.subr.mxu0 0.0
      %406 = vmatpush1.msra.mxu0 0.0
      %407 = vmatprep.subr.mxu0 0.0
      %408 = vmatpush1.msra.mxu0 0.0
      %409 = vmatprep.subr.mxu0 0.0
      %410 = vmatpush1.msra.mxu0 0.0
      %411 = vmatprep.subr.mxu0 0.0
      %412 = vmatpush1.msra.mxu0 0.0
      %413 = vmatprep.subr.mxu0 0.0
      %414 = vmatpush1.msra.mxu0 0.0
      %415 = vmatprep.subr.mxu0 0.0
      %416 = vmatpush1.msra.mxu0 0.0
      %417 = vmatprep.subr.mxu0 0.0
      %418 = vmatpush1.msra.mxu0 0.0
      %419 = vmatprep.subr.mxu0 0.0
      %420 = vmatpush1.msra.mxu0 0.0
      %421 = vmatprep.subr.mxu0 0.0
      %422 = vmatpush1.msra.mxu0 0.0
      %423 = vmatprep.subr.mxu0 0.0
      %424 = vmatpush1.msra.mxu0 0.0
      %425 = vmatprep.subr.mxu0 0.0
      %426 = vmatpush1.msra.mxu0 0.0
      %427 = vmatprep.subr.mxu0 0.0
      %428 = vmatpush1.msra.mxu0 0.0
      %429 = vmatprep.subr.mxu0 0.0
      %430 = vmatpush1.msra.mxu0 0.0
      %431 = vmatprep.subr.mxu0 0.0
      %432 = vmatpush1.msra.mxu0 0.0
      %433 = vmatprep.subr.mxu0 0.0
      %434 = vmatpush1.msra.mxu0 0.0
      %435 = vmatprep.subr.mxu0 0.0
      %436 = vmatpush1.msra.mxu0 0.0
      %437 = vmatprep.subr.mxu0 0.0
      %438 = vmatpush1.msra.mxu0 0.0
      %439 = vmatprep.subr.mxu0 0.0
      %440 = vmatpush1.msra.mxu0 0.0
      %441 = vmatprep.subr.mxu0 0.0
      %442 = vmatpush1.msra.mxu0 0.0
      %443 = vmatprep.subr.mxu0 0.0
      %444 = vmatpush1.msra.mxu0 0.0
      %445 = vmatprep.subr.mxu0 0.0
      %446 = vmatpush1.msra.mxu0 0.0
      %447 = vmatprep.subr.mxu0 0.0
      %448 = vmatpush1.msra.mxu0 0.0
      %449 = vmatprep.subr.mxu0 0.0
      %450 = vmatpush1.msra.mxu0 0.0
      %451 = vmatprep.mubr.f32.mxu0 0.0
      %v452 = vand.u32 %v240, 4294901760
      %v453 = vsub.f32 %v240, %v452
      %454 = vmatmul.mubr.f32.gmra.mrb[0].mxu0 %v453
      %v455 = vpop.f32.mrb[0].mxu0
      %v456 = vadd.f32 %v384, %v455
      %v457 = vpop.f32.mrb[0].mxu0
      %458 = vdwg.mxu0
      %459 = vmatprep.subr.mxu0 0.0
      %460 = vmatpush1.msra.mxu0 1.0
      %461 = vmatprep.subr.mxu0 0.0
      %462 = vmatpush1.msra.mxu0 1.0
      %463 = vmatprep.subr.mxu0 0.0
      %464 = vmatpush1.msra.mxu0 1.0
      %465 = vmatprep.subr.mxu0 0.0
      %466 = vmatpush1.msra.mxu0 1.0
      %467 = vmatprep.subr.mxu0 0.0
      %468 = vmatpush1.msra.mxu0 1.0
      %469 = vmatprep.subr.mxu0 0.0
      %470 = vmatpush1.msra.mxu0 1.0
      %471 = vmatprep.subr.mxu0 0.0
      %472 = vmatpush1.msra.mxu0 1.0
      %473 = vmatprep.subr.mxu0 0.0
      %474 = vmatpush1.msra.mxu0 1.0
      %475 = vmatprep.subr.mxu0 0.0
      %476 = vmatpush1.msra.mxu0 1.0
      %477 = vmatprep.subr.mxu0 0.0
      %478 = vmatpush1.msra.mxu0 1.0
      %479 = vmatprep.subr.mxu0 0.0
      %480 = vmatpush1.msra.mxu0 1.0
      %481 = vmatprep.subr.mxu0 0.0
      %482 = vmatpush1.msra.mxu0 1.0
      %483 = vmatprep.subr.mxu0 0.0
      %484 = vmatpush1.msra.mxu0 1.0
      %485 = vmatprep.subr.mxu0 0.0
      %486 = vmatpush1.msra.mxu0 1.0
      %487 = vmatprep.subr.mxu0 0.0
      %488 = vmatpush1.msra.mxu0 1.0
      %489 = vmatprep.subr.mxu0 0.0
      %490 = vmatpush1.msra.mxu0 1.0
      %491 = vmatprep.subr.mxu0 0.0
      %492 = vmatpush1.msra.mxu0 0.0
      %493 = vmatprep.subr.mxu0 0.0
      %494 = vmatpush1.msra.mxu0 0.0
      %495 = vmatprep.subr.mxu0 0.0
      %496 = vmatpush1.msra.mxu0 0.0
      %497 = vmatprep.subr.mxu0 0.0
      %498 = vmatpush1.msra.mxu0 0.0
      %499 = vmatprep.subr.mxu0 0.0
      %500 = vmatpush1.msra.mxu0 0.0
      %501 = vmatprep.subr.mxu0 0.0
      %502 = vmatpush1.msra.mxu0 0.0
      %503 = vmatprep.subr.mxu0 0.0
      %504 = vmatpush1.msra.mxu0 0.0
      %505 = vmatprep.subr.mxu0 0.0
      %506 = vmatpush1.msra.mxu0 0.0
      %507 = vmatprep.subr.mxu0 0.0
      %508 = vmatpush1.msra.mxu0 0.0
      %509 = vmatprep.subr.mxu0 0.0
      %510 = vmatpush1.msra.mxu0 0.0
      %511 = vmatprep.subr.mxu0 0.0
      %512 = vmatpush1.msra.mxu0 0.0
      %513 = vmatprep.subr.mxu0 0.0
      %514 = vmatpush1.msra.mxu0 0.0
      %515 = vmatprep.subr.mxu0 0.0
      %516 = vmatpush1.msra.mxu0 0.0
      %517 = vmatprep.subr.mxu0 0.0
      %518 = vmatpush1.msra.mxu0 0.0
      %519 = vmatprep.subr.mxu0 0.0
      %520 = vmatpush1.msra.mxu0 0.0
      %521 = vmatprep.subr.mxu0 0.0
      %522 = vmatpush1.msra.mxu0 0.0
      %523 = vmatprep.mubr.f32.mxu0 0.0
      %v524 = vand.u32 %v240, 4294901760
      %v525 = vsub.f32 %v240, %v524
      %v526 = vand.u32 %v525, 4294901760
      %527 = vmatmul.mubr.f32.gmra.mrb[0].mxu0 %v526
      %v528 = vpop.f32.mrb[0].mxu0
      %v529 = vadd.f32 %v456, %v528
      %v530 = vpop.f32.mrb[0].mxu0
      %531 = vdwg.mxu0
      %532 = vmatprep.subr.mxu0 0.0
      %533 = vmatpush1.msra.mxu0 0.0
      %534 = vmatprep.subr.mxu0 0.0
      %535 = vmatpush1.msra.mxu0 0.0
      %536 = vmatprep.subr.mxu0 0.0
      %537 = vmatpush1.msra.mxu0 0.0
      %538 = vmatprep.subr.mxu0 0.0
      %539 = vmatpush1.msra.mxu0 0.0
      %540 = vmatprep.subr.mxu0 0.0
      %541 = vmatpush1.msra.mxu0 0.0
      %542 = vmatprep.subr.mxu0 0.0
      %543 = vmatpush1.msra.mxu0 0.0
      %544 = vmatprep.subr.mxu0 0.0
      %545 = vmatpush1.msra.mxu0 0.0
      %546 = vmatprep.subr.mxu0 0.0
      %547 = vmatpush1.msra.mxu0 0.0
      %548 = vmatprep.subr.mxu0 0.0
      %549 = vmatpush1.msra.mxu0 0.0
      %550 = vmatprep.subr.mxu0 0.0
      %551 = vmatpush1.msra.mxu0 0.0
      %552 = vmatprep.subr.mxu0 0.0
      %553 = vmatpush1.msra.mxu0 0.0
      %554 = vmatprep.subr.mxu0 0.0
      %555 = vmatpush1.msra.mxu0 0.0
      %556 = vmatprep.subr.mxu0 0.0
      %557 = vmatpush1.msra.mxu0 0.0
      %558 = vmatprep.subr.mxu0 0.0
      %559 = vmatpush1.msra.mxu0 0.0
      %560 = vmatprep.subr.mxu0 0.0
      %561 = vmatpush1.msra.mxu0 0.0
      %562 = vmatprep.subr.mxu0 0.0
      %563 = vmatpush1.msra.mxu0 0.0
      %564 = vmatprep.subr.mxu0 0.0
      %565 = vmatpush1.msra.mxu0 0.0
      %566 = vmatprep.subr.mxu0 0.0
      %567 = vmatpush1.msra.mxu0 0.0
      %568 = vmatprep.subr.mxu0 0.0
      %569 = vmatpush1.msra.mxu0 0.0
      %570 = vmatprep.subr.mxu0 0.0
      %571 = vmatpush1.msra.mxu0 0.0
      %572 = vmatprep.subr.mxu0 0.0
      %573 = vmatpush1.msra.mxu0 0.0
      %574 = vmatprep.subr.mxu0 0.0
      %575 = vmatpush1.msra.mxu0 0.0
      %576 = vmatprep.subr.mxu0 0.0
      %577 = vmatpush1.msra.mxu0 0.0
      %578 = vmatprep.subr.mxu0 0.0
      %579 = vmatpush1.msra.mxu0 0.0
      %580 = vmatprep.subr.mxu0 0.0
      %581 = vmatpush1.msra.mxu0 0.0
      %582 = vmatprep.subr.mxu0 0.0
      %583 = vmatpush1.msra.mxu0 0.0
      %584 = vmatprep.subr.mxu0 0.0
      %585 = vmatpush1.msra.mxu0 0.0
      %586 = vmatprep.subr.mxu0 0.0
      %587 = vmatpush1.msra.mxu0 0.0
      %588 = vmatprep.subr.mxu0 0.0
      %589 = vmatpush1.msra.mxu0 0.0
      %590 = vmatprep.subr.mxu0 0.0
      %591 = vmatpush1.msra.mxu0 0.0
      %592 = vmatprep.subr.mxu0 0.0
      %593 = vmatpush1.msra.mxu0 0.0
      %594 = vmatprep.subr.mxu0 0.0
      %595 = vmatpush1.msra.mxu0 0.0
      %596 = vmatprep.mubr.f32.mxu0 0.0
      %v597 = vand.u32 %v240, 4294901760
      %598 = vmatmul.mubr.f32.gmra.mrb[0].mxu0 %v597
      %v599 = vpop.f32.mrb[0].mxu0
      %v600 = vadd.f32 %v529, %v599
      %v601 = vpop.f32.mrb[0].mxu0
      %602 = vdwg.mxu0
      %603 = vmatprep.subr.mxu0 0.0
      %604 = vmatpush1.msra.mxu0 1.0
      %605 = vmatprep.subr.mxu0 0.0
      %606 = vmatpush1.msra.mxu0 1.0
      %607 = vmatprep.subr.mxu0 0.0
      %608 = vmatpush1.msra.mxu0 1.0
      %609 = vmatprep.subr.mxu0 0.0
      %610 = vmatpush1.msra.mxu0 1.0
      %611 = vmatprep.subr.mxu0 0.0
      %612 = vmatpush1.msra.mxu0 1.0
      %613 = vmatprep.subr.mxu0 0.0
      %614 = vmatpush1.msra.mxu0 1.0
      %615 = vmatprep.subr.mxu0 0.0
      %616 = vmatpush1.msra.mxu0 1.0
      %617 = vmatprep.subr.mxu0 0.0
      %618 = vmatpush1.msra.mxu0 1.0
      %619 = vmatprep.subr.mxu0 0.0
      %620 = vmatpush1.msra.mxu0 1.0
      %621 = vmatprep.subr.mxu0 0.0
      %622 = vmatpush1.msra.mxu0 1.0
      %623 = vmatprep.subr.mxu0 0.0
      %624 = vmatpush1.msra.mxu0 1.0
      %625 = vmatprep.subr.mxu0 0.0
      %626 = vmatpush1.msra.mxu0 1.0
      %627 = vmatprep.subr.mxu0 0.0
      %628 = vmatpush1.msra.mxu0 1.0
      %629 = vmatprep.subr.mxu0 0.0
      %630 = vmatpush1.msra.mxu0 1.0
      %631 = vmatprep.subr.mxu0 0.0
      %632 = vmatpush1.msra.mxu0 1.0
      %633 = vmatprep.subr.mxu0 0.0
      %634 = vmatpush1.msra.mxu0 1.0
      %635 = vmatprep.subr.mxu0 0.0
      %636 = vmatpush1.msra.mxu0 0.0
      %637 = vmatprep.subr.mxu0 0.0
      %638 = vmatpush1.msra.mxu0 0.0
      %639 = vmatprep.subr.mxu0 0.0
      %640 = vmatpush1.msra.mxu0 0.0
      %641 = vmatprep.subr.mxu0 0.0
      %642 = vmatpush1.msra.mxu0 0.0
      %643 = vmatprep.subr.mxu0 0.0
      %644 = vmatpush1.msra.mxu0 0.0
      %645 = vmatprep.subr.mxu0 0.0
      %646 = vmatpush1.msra.mxu0 0.0
      %647 = vmatprep.subr.mxu0 0.0
      %648 = vmatpush1.msra.mxu0 0.0
      %649 = vmatprep.subr.mxu0 0.0
      %650 = vmatpush1.msra.mxu0 0.0
      %651 = vmatprep.subr.mxu0 0.0
      %652 = vmatpush1.msra.mxu0 0.0
      %653 = vmatprep.subr.mxu0 0.0
      %654 = vmatpush1.msra.mxu0 0.0
      %655 = vmatprep.subr.mxu0 0.0
      %656 = vmatpush1.msra.mxu0 0.0
      %657 = vmatprep.subr.mxu0 0.0
      %658 = vmatpush1.msra.mxu0 0.0
      %659 = vmatprep.subr.mxu0 0.0
      %660 = vmatpush1.msra.mxu0 0.0
      %661 = vmatprep.subr.mxu0 0.0
      %662 = vmatpush1.msra.mxu0 0.0
      %663 = vmatprep.subr.mxu0 0.0
      %664 = vmatpush1.msra.mxu0 0.0
      %665 = vmatprep.subr.mxu0 0.0
      %666 = vmatpush1.msra.mxu0 0.0
      %667 = vmatprep.mubr.f32.mxu0 0.0
      %v668 = vand.u32 %v240, 4294901760
      %669 = vmatmul.mubr.f32.gmra.mrb[0].mxu0 %v668
      %v670 = vpop.f32.mrb[0].mxu0
      %v671 = vadd.f32 %v600, %v670
      %v672 = vpop.f32.mrb[0].mxu0
      %673 = vdwg.mxu0
      %v674 = vsub.f32 %v231, %v232
      %v675 = vmul.f32 %v674, 1.442695
      %v676 = vpow.pop %v675
      %v677 = vld [vmem:[#allocation3] sm:$0xff]
      %v678 = vmul.f32 %v676, %v677
      %v679 = vadd.f32 %v678, %v671
      %vm680 = vcmask 7168
      %681 = vst.msk [vmem:[#allocation3] sm:$0xff] %vm680, %v679
      %682 = vst.msk [vmem:[#allocation2] sm:$0xff] %vm680, %v232
      %s683 = smul.u32 %s20, 128
      %v684 = vstv %s683
      %v685 = vsub.s32 %v225, %v684
      %686 = vset.pattern.permute.xlu0 0
      %687 = vperm.xlu0 %686, %v685
      %v688 = vpop.permute.xlu0 %687
      %vm689 = vcmp.eq.s32.totalorder %v228, %v688
      %v690 = vsel %vm689, %v224, 0.0
      %v691 = vld [vmem:[#allocation4] sm:$0xff]
      %692 = vmatprep.subr.mxu0 0.0
      %693 = vmatpush1.msra.mxu0 1.0
      %694 = vmatprep.subr.mxu0 0.0
      %695 = vmatpush1.msra.mxu0 1.0
      %696 = vmatprep.subr.mxu0 0.0
      %697 = vmatpush1.msra.mxu0 1.0
      %698 = vmatprep.subr.mxu0 0.0
      %699 = vmatpush1.msra.mxu0 1.0
      %700 = vmatprep.subr.mxu0 0.0
      %701 = vmatpush1.msra.mxu0 1.0
      %702 = vmatprep.subr.mxu0 0.0
      %703 = vmatpush1.msra.mxu0 1.0
      %704 = vmatprep.subr.mxu0 0.0
      %705 = vmatpush1.msra.mxu0 1.0
      %706 = vmatprep.subr.mxu0 0.0
      %707 = vmatpush1.msra.mxu0 1.0
      %708 = vmatprep.subr.mxu0 0.0
      %709 = vmatpush1.msra.mxu0 1.0
      %710 = vmatprep.subr.mxu0 0.0
      %711 = vmatpush1.msra.mxu0 1.0
      %712 = vmatprep.subr.mxu0 0.0
      %713 = vmatpush1.msra.mxu0 1.0
      %714 = vmatprep.subr.mxu0 0.0
      %715 = vmatpush1.msra.mxu0 1.0
      %716 = vmatprep.subr.mxu0 0.0
      %717 = vmatpush1.msra.mxu0 1.0
      %718 = vmatprep.subr.mxu0 0.0
      %719 = vmatpush1.msra.mxu0 1.0
      %720 = vmatprep.subr.mxu0 0.0
      %721 = vmatpush1.msra.mxu0 1.0
      %722 = vmatprep.subr.mxu0 0.0
      %723 = vmatpush1.msra.mxu0 1.0
      %724 = vmatprep.subr.mxu0 0.0
      %725 = vmatpush1.msra.mxu0 0.0
      %726 = vmatprep.subr.mxu0 0.0
      %727 = vmatpush1.msra.mxu0 0.0
      %728 = vmatprep.subr.mxu0 0.0
      %729 = vmatpush1.msra.mxu0 0.0
      %730 = vmatprep.subr.mxu0 0.0
      %731 = vmatpush1.msra.mxu0 0.0
      %732 = vmatprep.subr.mxu0 0.0
      %733 = vmatpush1.msra.mxu0 0.0
      %734 = vmatprep.subr.mxu0 0.0
      %735 = vmatpush1.msra.mxu0 0.0
      %736 = vmatprep.subr.mxu0 0.0
      %737 = vmatpush1.msra.mxu0 0.0
      %738 = vmatprep.subr.mxu0 0.0
      %739 = vmatpush1.msra.mxu0 0.0
      %740 = vmatprep.subr.mxu0 0.0
      %741 = vmatpush1.msra.mxu0 0.0
      %742 = vmatprep.subr.mxu0 0.0
      %743 = vmatpush1.msra.mxu0 0.0
      %744 = vmatprep.subr.mxu0 0.0
      %745 = vmatpush1.msra.mxu0 0.0
      %746 = vmatprep.subr.mxu0 0.0
      %747 = vmatpush1.msra.mxu0 0.0
      %748 = vmatprep.subr.mxu0 0.0
      %749 = vmatpush1.msra.mxu0 0.0
      %750 = vmatprep.subr.mxu0 0.0
      %751 = vmatpush1.msra.mxu0 0.0
      %752 = vmatprep.subr.mxu0 0.0
      %753 = vmatpush1.msra.mxu0 0.0
      %754 = vmatprep.subr.mxu0 0.0
      %755 = vmatpush1.msra.mxu0 0.0
      %756 = vmatprep.mubr.f32.mxu0 0.0
      %v757 = vand.u32 %v690, 4294901760
      %v758 = vsub.f32 %v690, %v757
      %v759 = vand.u32 %v758, 4294901760
      %v760 = vsub.f32 %v758, %v759
      %v761 = vand.u32 %v760, 4294901760
      %762 = vmatmul.mubr.f32.gmra.mrb[0].mxu0 %v761
      %v763 = vpop.f32.mrb[0].mxu0
      %v764 = vadd.f32 0.0, %v763
      %v765 = vpop.f32.mrb[0].mxu0
      %766 = vdwg.mxu0
      %767 = vmatprep.subr.mxu0 0.0
      %768 = vmatpush1.msra.mxu0 0.0
      %769 = vmatprep.subr.mxu0 0.0
      %770 = vmatpush1.msra.mxu0 0.0
      %771 = vmatprep.subr.mxu0 0.0
      %772 = vmatpush1.msra.mxu0 0.0
      %773 = vmatprep.subr.mxu0 0.0
      %774 = vmatpush1.msra.mxu0 0.0
      %775 = vmatprep.subr.mxu0 0.0
      %776 = vmatpush1.msra.mxu0 0.0
      %777 = vmatprep.subr.mxu0 0.0
      %778 = vmatpush1.msra.mxu0 0.0
      %779 = vmatprep.subr.mxu0 0.0
      %780 = vmatpush1.msra.mxu0 0.0
      %781 = vmatprep.subr.mxu0 0.0
      %782 = vmatpush1.msra.mxu0 0.0
      %783 = vmatprep.subr.mxu0 0.0
      %784 = vmatpush1.msra.mxu0 0.0
      %785 = vmatprep.subr.mxu0 0.0
      %786 = vmatpush1.msra.mxu0 0.0
      %787 = vmatprep.subr.mxu0 0.0
      %788 = vmatpush1.msra.mxu0 0.0
      %789 = vmatprep.subr.mxu0 0.0
      %790 = vmatpush1.msra.mxu0 0.0
      %791 = vmatprep.subr.mxu0 0.0
      %792 = vmatpush1.msra.mxu0 0.0
      %793 = vmatprep.subr.mxu0 0.0
      %794 = vmatpush1.msra.mxu0 0.0
      %795 = vmatprep.subr.mxu0 0.0
      %796 = vmatpush1.msra.mxu0 0.0
      %797 = vmatprep.subr.mxu0 0.0
      %798 = vmatpush1.msra.mxu0 0.0
      %799 = vmatprep.subr.mxu0 0.0
      %800 = vmatpush1.msra.mxu0 0.0
      %801 = vmatprep.subr.mxu0 0.0
      %802 = vmatpush1.msra.mxu0 0.0
      %803 = vmatprep.subr.mxu0 0.0
      %804 = vmatpush1.msra.mxu0 0.0
      %805 = vmatprep.subr.mxu0 0.0
      %806 = vmatpush1.msra.mxu0 0.0
      %807 = vmatprep.subr.mxu0 0.0
      %808 = vmatpush1.msra.mxu0 0.0
      %809 = vmatprep.subr.mxu0 0.0
      %810 = vmatpush1.msra.mxu0 0.0
      %811 = vmatprep.subr.mxu0 0.0
      %812 = vmatpush1.msra.mxu0 0.0
      %813 = vmatprep.subr.mxu0 0.0
      %814 = vmatpush1.msra.mxu0 0.0
      %815 = vmatprep.subr.mxu0 0.0
      %816 = vmatpush1.msra.mxu0 0.0
      %817 = vmatprep.subr.mxu0 0.0
      %818 = vmatpush1.msra.mxu0 0.0
      %819 = vmatprep.subr.mxu0 0.0
      %820 = vmatpush1.msra.mxu0 0.0
      %821 = vmatprep.subr.mxu0 0.0
      %822 = vmatpush1.msra.mxu0 0.0
      %823 = vmatprep.subr.mxu0 0.0
      %824 = vmatpush1.msra.mxu0 0.0
      %825 = vmatprep.subr.mxu0 0.0
      %826 = vmatpush1.msra.mxu0 0.0
      %827 = vmatprep.subr.mxu0 0.0
      %828 = vmatpush1.msra.mxu0 0.0
      %829 = vmatprep.subr.mxu0 0.0
      %830 = vmatpush1.msra.mxu0 0.0
      %831 = vmatprep.mubr.f32.mxu0 0.0
      %v832 = vand.u32 %v690, 4294901760
      %833 = vmatmul.mubr.f32.gmra.mrb[0].mxu0 %v832
      %v834 = vpop.f32.mrb[0].mxu0
      %v835 = vadd.f32 %v764, %v834
      %v836 = vpop.f32.mrb[0].mxu0
      %837 = vdwg.mxu0
      %838 = vmatprep.subr.mxu0 0.0
      %839 = vmatpush1.msra.mxu0 0.0
      %840 = vmatprep.subr.mxu0 0.0
      %841 = vmatpush1.msra.mxu0 0.0
      %842 = vmatprep.subr.mxu0 0.0
      %843 = vmatpush1.msra.mxu0 0.0
      %844 = vmatprep.subr.mxu0 0.0
      %845 = vmatpush1.msra.mxu0 0.0
      %846 = vmatprep.subr.mxu0 0.0
      %847 = vmatpush1.msra.mxu0 0.0
      %848 = vmatprep.subr.mxu0 0.0
      %849 = vmatpush1.msra.mxu0 0.0
      %850 = vmatprep.subr.mxu0 0.0
      %851 = vmatpush1.msra.mxu0 0.0
      %852 = vmatprep.subr.mxu0 0.0
      %853 = vmatpush1.msra.mxu0 0.0
      %854 = vmatprep.subr.mxu0 0.0
      %855 = vmatpush1.msra.mxu0 0.0
      %856 = vmatprep.subr.mxu0 0.0
      %857 = vmatpush1.msra.mxu0 0.0
      %858 = vmatprep.subr.mxu0 0.0
      %859 = vmatpush1.msra.mxu0 0.0
      %860 = vmatprep.subr.mxu0 0.0
      %861 = vmatpush1.msra.mxu0 0.0
      %862 = vmatprep.subr.mxu0 0.0
      %863 = vmatpush1.msra.mxu0 0.0
      %864 = vmatprep.subr.mxu0 0.0
      %865 = vmatpush1.msra.mxu0 0.0
      %866 = vmatprep.subr.mxu0 0.0
      %867 = vmatpush1.msra.mxu0 0.0
      %868 = vmatprep.subr.mxu0 0.0
      %869 = vmatpush1.msra.mxu0 0.0
      %870 = vmatprep.subr.mxu0 0.0
      %871 = vmatpush1.msra.mxu0 0.0
      %872 = vmatprep.subr.mxu0 0.0
      %873 = vmatpush1.msra.mxu0 0.0
      %874 = vmatprep.subr.mxu0 0.0
      %875 = vmatpush1.msra.mxu0 0.0
      %876 = vmatprep.subr.mxu0 0.0
      %877 = vmatpush1.msra.mxu0 0.0
      %878 = vmatprep.subr.mxu0 0.0
      %879 = vmatpush1.msra.mxu0 0.0
      %880 = vmatprep.subr.mxu0 0.0
      %881 = vmatpush1.msra.mxu0 0.0
      %882 = vmatprep.subr.mxu0 0.0
      %883 = vmatpush1.msra.mxu0 0.0
      %884 = vmatprep.subr.mxu0 0.0
      %885 = vmatpush1.msra.mxu0 0.0
      %886 = vmatprep.subr.mxu0 0.0
      %887 = vmatpush1.msra.mxu0 0.0
      %888 = vmatprep.subr.mxu0 0.0
      %889 = vmatpush1.msra.mxu0 0.0
      %890 = vmatprep.subr.mxu0 0.0
      %891 = vmatpush1.msra.mxu0 0.0
      %892 = vmatprep.subr.mxu0 0.0
      %893 = vmatpush1.msra.mxu0 0.0
      %894 = vmatprep.subr.mxu0 0.0
      %895 = vmatpush1.msra.mxu0 0.0
      %896 = vmatprep.subr.mxu0 0.0
      %897 = vmatpush1.msra.mxu0 0.0
      %898 = vmatprep.subr.mxu0 0.0
      %899 = vmatpush1.msra.mxu0 0.0
      %900 = vmatprep.subr.mxu0 0.0
      %901 = vmatpush1.msra.mxu0 0.0
      %902 = vmatprep.mubr.f32.mxu0 0.0
      %v903 = vand.u32 %v690, 4294901760
      %v904 = vsub.f32 %v690, %v903
      %905 = vmatmul.mubr.f32.gmra.mrb[0].mxu0 %v904
      %v906 = vpop.f32.mrb[0].mxu0
      %v907 = vadd.f32 %v835, %v906
      %v908 = vpop.f32.mrb[0].mxu0
      %909 = vdwg.mxu0
      %910 = vmatprep.subr.mxu0 0.0
      %911 = vmatpush1.msra.mxu0 1.0
      %912 = vmatprep.subr.mxu0 0.0
      %913 = vmatpush1.msra.mxu0 1.0
      %914 = vmatprep.subr.mxu0 0.0
      %915 = vmatpush1.msra.mxu0 1.0
      %916 = vmatprep.subr.mxu0 0.0
      %917 = vmatpush1.msra.mxu0 1.0
      %918 = vmatprep.subr.mxu0 0.0
      %919 = vmatpush1.msra.mxu0 1.0
      %920 = vmatprep.subr.mxu0 0.0
      %921 = vmatpush1.msra.mxu0 1.0
      %922 = vmatprep.subr.mxu0 0.0
      %923 = vmatpush1.msra.mxu0 1.0
      %924 = vmatprep.subr.mxu0 0.0
      %925 = vmatpush1.msra.mxu0 1.0
      %926 = vmatprep.subr.mxu0 0.0
      %927 = vmatpush1.msra.mxu0 1.0
      %928 = vmatprep.subr.mxu0 0.0
      %929 = vmatpush1.msra.mxu0 1.0
      %930 = vmatprep.subr.mxu0 0.0
      %931 = vmatpush1.msra.mxu0 1.0
      %932 = vmatprep.subr.mxu0 0.0
      %933 = vmatpush1.msra.mxu0 1.0
      %934 = vmatprep.subr.mxu0 0.0
      %935 = vmatpush1.msra.mxu0 1.0
      %936 = vmatprep.subr.mxu0 0.0
      %937 = vmatpush1.msra.mxu0 1.0
      %938 = vmatprep.subr.mxu0 0.0
      %939 = vmatpush1.msra.mxu0 1.0
      %940 = vmatprep.subr.mxu0 0.0
      %941 = vmatpush1.msra.mxu0 1.0
      %942 = vmatprep.subr.mxu0 0.0
      %943 = vmatpush1.msra.mxu0 0.0
      %944 = vmatprep.subr.mxu0 0.0
      %945 = vmatpush1.msra.mxu0 0.0
      %946 = vmatprep.subr.mxu0 0.0
      %947 = vmatpush1.msra.mxu0 0.0
      %948 = vmatprep.subr.mxu0 0.0
      %949 = vmatpush1.msra.mxu0 0.0
      %950 = vmatprep.subr.mxu0 0.0
      %951 = vmatpush1.msra.mxu0 0.0
      %952 = vmatprep.subr.mxu0 0.0
      %953 = vmatpush1.msra.mxu0 0.0
      %954 = vmatprep.subr.mxu0 0.0
      %955 = vmatpush1.msra.mxu0 0.0
      %956 = vmatprep.subr.mxu0 0.0
      %957 = vmatpush1.msra.mxu0 0.0
      %958 = vmatprep.subr.mxu0 0.0
      %959 = vmatpush1.msra.mxu0 0.0
      %960 = vmatprep.subr.mxu0 0.0
      %961 = vmatpush1.msra.mxu0 0.0
      %962 = vmatprep.subr.mxu0 0.0
      %963 = vmatpush1.msra.mxu0 0.0
      %964 = vmatprep.subr.mxu0 0.0
      %965 = vmatpush1.msra.mxu0 0.0
      %966 = vmatprep.subr.mxu0 0.0
      %967 = vmatpush1.msra.mxu0 0.0
      %968 = vmatprep.subr.mxu0 0.0
      %969 = vmatpush1.msra.mxu0 0.0
      %970 = vmatprep.subr.mxu0 0.0
      %971 = vmatpush1.msra.mxu0 0.0
      %972 = vmatprep.subr.mxu0 0.0
      %973 = vmatpush1.msra.mxu0 0.0
      %974 = vmatprep.mubr.f32.mxu0 0.0
      %v975 = vand.u32 %v690, 4294901760
      %v976 = vsub.f32 %v690, %v975
      %v977 = vand.u32 %v976, 4294901760
      %978 = vmatmul.mubr.f32.gmra.mrb[0].mxu0 %v977
      %v979 = vpop.f32.mrb[0].mxu0
      %v980 = vadd.f32 %v907, %v979
      %v981 = vpop.f32.mrb[0].mxu0
      %982 = vdwg.mxu0
      %983 = vmatprep.subr.mxu0 0.0
      %984 = vmatpush1.msra.mxu0 0.0
      %985 = vmatprep.subr.mxu0 0.0
      %986 = vmatpush1.msra.mxu0 0.0
      %987 = vmatprep.subr.mxu0 0.0
      %988 = vmatpush1.msra.mxu0 0.0
      %989 = vmatprep.subr.mxu0 0.0
      %990 = vmatpush1.msra.mxu0 0.0
      %991 = vmatprep.subr.mxu0 0.0
      %992 = vmatpush1.msra.mxu0 0.0
      %993 = vmatprep.subr.mxu0 0.0
      %994 = vmatpush1.msra.mxu0 0.0
      %995 = vmatprep.subr.mxu0 0.0
      %996 = vmatpush1.msra.mxu0 0.0
      %997 = vmatprep.subr.mxu0 0.0
      %998 = vmatpush1.msra.mxu0 0.0
      %999 = vmatprep.subr.mxu0 0.0
      %1000 = vmatpush1.msra.mxu0 0.0
      %1001 = vmatprep.subr.mxu0 0.0
      %1002 = vmatpush1.msra.mxu0 0.0
      %1003 = vmatprep.subr.mxu0 0.0
      %1004 = vmatpush1.msra.mxu0 0.0
      %1005 = vmatprep.subr.mxu0 0.0
      %1006 = vmatpush1.msra.mxu0 0.0
      %1007 = vmatprep.subr.mxu0 0.0
      %1008 = vmatpush1.msra.mxu0 0.0
      %1009 = vmatprep.subr.mxu0 0.0
      %1010 = vmatpush1.msra.mxu0 0.0
      %1011 = vmatprep.subr.mxu0 0.0
      %1012 = vmatpush1.msra.mxu0 0.0
      %1013 = vmatprep.subr.mxu0 0.0
      %1014 = vmatpush1.msra.mxu0 0.0
      %1015 = vmatprep.subr.mxu0 0.0
      %1016 = vmatpush1.msra.mxu0 0.0
      %1017 = vmatprep.subr.mxu0 0.0
      %1018 = vmatpush1.msra.mxu0 0.0
      %1019 = vmatprep.subr.mxu0 0.0
      %1020 = vmatpush1.msra.mxu0 0.0
      %1021 = vmatprep.subr.mxu0 0.0
      %1022 = vmatpush1.msra.mxu0 0.0
      %1023 = vmatprep.subr.mxu0 0.0
      %1024 = vmatpush1.msra.mxu0 0.0
      %1025 = vmatprep.subr.mxu0 0.0
      %1026 = vmatpush1.msra.mxu0 0.0
      %1027 = vmatprep.subr.mxu0 0.0
      %1028 = vmatpush1.msra.mxu0 0.0
      %1029 = vmatprep.subr.mxu0 0.0
      %1030 = vmatpush1.msra.mxu0 0.0
      %1031 = vmatprep.subr.mxu0 0.0
      %1032 = vmatpush1.msra.mxu0 0.0
      %1033 = vmatprep.subr.mxu0 0.0
      %1034 = vmatpush1.msra.mxu0 0.0
      %1035 = vmatprep.subr.mxu0 0.0
      %1036 = vmatpush1.msra.mxu0 0.0
      %1037 = vmatprep.subr.mxu0 0.0
      %1038 = vmatpush1.msra.mxu0 0.0
      %1039 = vmatprep.subr.mxu0 0.0
      %1040 = vmatpush1.msra.mxu0 0.0
      %1041 = vmatprep.subr.mxu0 0.0
      %1042 = vmatpush1.msra.mxu0 0.0
      %1043 = vmatprep.subr.mxu0 0.0
      %1044 = vmatpush1.msra.mxu0 0.0
      %1045 = vmatprep.subr.mxu0 0.0
      %1046 = vmatpush1.msra.mxu0 0.0
      %1047 = vmatprep.mubr.f32.mxu0 0.0
      %v1048 = vand.u32 %v690, 4294901760
      %1049 = vmatmul.mubr.f32.gmra.mrb[0].mxu0 %v1048
      %v1050 = vpop.f32.mrb[0].mxu0
      %v1051 = vadd.f32 %v980, %v1050
      %v1052 = vpop.f32.mrb[0].mxu0
      %1053 = vdwg.mxu0
      %1054 = vmatprep.subr.mxu0 0.0
      %1055 = vmatpush1.msra.mxu0 1.0
      %1056 = vmatprep.subr.mxu0 0.0
      %1057 = vmatpush1.msra.mxu0 1.0
      %1058 = vmatprep.subr.mxu0 0.0
      %1059 = vmatpush1.msra.mxu0 1.0
      %1060 = vmatprep.subr.mxu0 0.0
      %1061 = vmatpush1.msra.mxu0 1.0
      %1062 = vmatprep.subr.mxu0 0.0
      %1063 = vmatpush1.msra.mxu0 1.0
      %1064 = vmatprep.subr.mxu0 0.0
      %1065 = vmatpush1.msra.mxu0 1.0
      %1066 = vmatprep.subr.mxu0 0.0
      %1067 = vmatpush1.msra.mxu0 1.0
      %1068 = vmatprep.subr.mxu0 0.0
      %1069 = vmatpush1.msra.mxu0 1.0
      %1070 = vmatprep.subr.mxu0 0.0
      %1071 = vmatpush1.msra.mxu0 1.0
      %1072 = vmatprep.subr.mxu0 0.0
      %1073 = vmatpush1.msra.mxu0 1.0
      %1074 = vmatprep.subr.mxu0 0.0
      %1075 = vmatpush1.msra.mxu0 1.0
      %1076 = vmatprep.subr.mxu0 0.0
      %1077 = vmatpush1.msra.mxu0 1.0
      %1078 = vmatprep.subr.mxu0 0.0
      %1079 = vmatpush1.msra.mxu0 1.0
      %1080 = vmatprep.subr.mxu0 0.0
      %1081 = vmatpush1.msra.mxu0 1.0
      %1082 = vmatprep.subr.mxu0 0.0
      %1083 = vmatpush1.msra.mxu0 1.0
      %1084 = vmatprep.subr.mxu0 0.0
      %1085 = vmatpush1.msra.mxu0 1.0
      %1086 = vmatprep.subr.mxu0 0.0
      %1087 = vmatpush1.msra.mxu0 0.0
      %1088 = vmatprep.subr.mxu0 0.0
      %1089 = vmatpush1.msra.mxu0 0.0
      %1090 = vmatprep.subr.mxu0 0.0
      %1091 = vmatpush1.msra.mxu0 0.0
      %1092 = vmatprep.subr.mxu0 0.0
      %1093 = vmatpush1.msra.mxu0 0.0
      %1094 = vmatprep.subr.mxu0 0.0
      %1095 = vmatpush1.msra.mxu0 0.0
      %1096 = vmatprep.subr.mxu0 0.0
      %1097 = vmatpush1.msra.mxu0 0.0
      %1098 = vmatprep.subr.mxu0 0.0
      %1099 = vmatpush1.msra.mxu0 0.0
      %1100 = vmatprep.subr.mxu0 0.0
      %1101 = vmatpush1.msra.mxu0 0.0
      %1102 = vmatprep.subr.mxu0 0.0
      %1103 = vmatpush1.msra.mxu0 0.0
      %1104 = vmatprep.subr.mxu0 0.0
      %1105 = vmatpush1.msra.mxu0 0.0
      %1106 = vmatprep.subr.mxu0 0.0
      %1107 = vmatpush1.msra.mxu0 0.0
      %1108 = vmatprep.subr.mxu0 0.0
      %1109 = vmatpush1.msra.mxu0 0.0
      %1110 = vmatprep.subr.mxu0 0.0
      %1111 = vmatpush1.msra.mxu0 0.0
      %1112 = vmatprep.subr.mxu0 0.0
      %1113 = vmatpush1.msra.mxu0 0.0
      %1114 = vmatprep.subr.mxu0 0.0
      %1115 = vmatpush1.msra.mxu0 0.0
      %1116 = vmatprep.subr.mxu0 0.0
      %1117 = vmatpush1.msra.mxu0 0.0
      %1118 = vmatprep.mubr.f32.mxu0 0.0
      %v1119 = vand.u32 %v690, 4294901760
      %1120 = vmatmul.mubr.f32.gmra.mrb[0].mxu0 %v1119
      %v1121 = vpop.f32.mrb[0].mxu0
      %v1122 = vadd.f32 %v1051, %v1121
      %v1123 = vpop.f32.mrb[0].mxu0
      %1124 = vdwg.mxu0
      %v1125 = vadd.f32 %v691, %v1122
      %1126 = vst.msk [vmem:[#allocation4] sm:$0xff] %vm680, %v1125
      // Predicated region
      $region33: #{tpu_custom_call.1} parent=27 // pred_check
        %p1127 = pneg %p216
      $region34: #{tpu_custom_call.1} parent=27 // pred_check_branch
        %1129 = sbr.rel (%p1127) target = $region36
      $region35: #{tpu_custom_call.1} parent=27 // pred_region
        %v1130 = vld [vmem:[#allocation2] sm:$0xff]
        %v1131 = vld [vmem:[#allocation3] sm:$0xff]
        %v1132 = vlog2.pop %v1131
        %v1133 = vmul.f32 %v1132, 0.6931472
        %v1134 = vadd.f32 %v1130, %v1133
        %v1135 = vld [vmem:[#allocation4] sm:$0xff]
        %v1136 = vsub.f32 %v1134, %v1135
        %v1137 = vsel %vm226, %v1136, 0.0
        %1138 = vst.msk [vmem:[%s215] sm:$0xff] %vm680, %v1137
      $region36: #{tpu_custom_call.1} parent=27 // pred_fallthru
        _
      %p1139 = scmp.lt.s32.totalorder %s18, 1
      %s1140 = scalar_select %p1139, %s18, 1
      %p1141 = scmp.lt.s32.totalorder %s19, 0
      %s1142 = scalar_select %p1141, %s19, 0
      %s1143 = sadd.s32 %s1142, %s1140
      %s1144 = smul.addr %s1143, 8
      %s1145 = scalar_lea.vmem %s2, %s1144
      // Predicated region
      $region37: #{tpu_custom_call.1} parent=27 // pred_check
        %p1146 = pneg %p110
      $region38: #{tpu_custom_call.1} parent=27 // pred_check_branch
        %1148 = sbr.rel (%p1146) target = $region40
      $region39: #{tpu_custom_call.1} parent=27 // pred_region
        _
      $region40: #{tpu_custom_call.1} parent=27 // pred_fallthru
        _
    $region28: #{tpu_custom_call.1} parent=5 // pred_fallthru
      _
    %p1149 = scmp.le.s32.totalorder 2, %s8
    // Predicated region
    $region41: #{tpu_custom_call.1} parent=5 // pred_check
      %p1150 = pneg %p1149
    $region42: #{tpu_custom_call.1} parent=5 // pred_check_branch
      %1152 = sbr.rel (%p1150) target = $region44
    $region43: #{tpu_custom_call.1} parent=5 // pred_region
      %s1153 = ssub.s32 %s8, 2
      // Predicated region
      $region45: #{tpu_custom_call.1} parent=43 // pred_check
        %p1154 = pneg %p116
      $region46: #{tpu_custom_call.1} parent=43 // pred_check_branch
        %1156 = sbr.rel (%p1154) target = $region48
      $region47: #{tpu_custom_call.1} parent=43 // pred_region
        %p1157 = scmp.lt.s32.totalorder %s21, 1
        %s1158 = scalar_select %p1157, %s21, 1
        %p1159 = scmp.lt.s32.totalorder %s22, 0
        %s1160 = scalar_select %p1159, %s22, 0
        %s1161 = sadd.s32 %s1160, %s1158
        %s1162 = smul.addr %s1161, 8
        %s1163 = scalar_lea.vmem %s2, %s1162
      $region48: #{tpu_custom_call.1} parent=43 // pred_fallthru
        _
    $region44: #{tpu_custom_call.1} parent=5 // pred_fallthru
      _
  $region6: #{tpu_custom_call.1} parent=0 // loop_footer
    %s12 = sadd.s32 1, %s8
  $region7: #{tpu_custom_call.1} parent=0 // loop_footer_branch
    %7 = sbr.rel target = $region3
  $region8: #{tpu_custom_call.1} parent=0 // loop_exit
    _

</llo_original>
